<compile_context>
chip_gen: v7x
topology: tpu7x:2x2x1
jax: 0.10.0
libtpu: 0.0.40
codegen_flags: <defaults>
</compile_context>

<pallas_src>
from functools import partial

import jax
import jax.numpy as jnp
from jax import lax
from jax.experimental import pallas as pl
from jax.experimental.pallas import tpu as pltpu


def _sep_conv_head_kernel(x_ref, xtop_ref, xbot_ref, dw_ref, pw_ref, bsh_ref,
                          fw_ref, fb_ref, mask_ref, out_ref, *, img_w):
    """One (batch, row-band) tile.

    x_ref:    (1, Cin, L)    current band, L = tile_rows * W flattened pixels
    xtop_ref: (1, Cin, HALO) flattened pixels just before the band (row above)
    xbot_ref: (1, Cin, HALO) flattened pixels just after the band (row below)
    dw_ref:   (9, Cin, 1)    depthwise 3x3 taps, t = kh*3 + kw
    pw_ref:   (Cmid, Cin)    pointwise 1x1 weights with BatchNorm scale folded in
    bsh_ref:  (Cmid, 1)      folded BatchNorm shift
    fw_ref:   (O, Cmid)      final 1x1 conv weights
    fb_ref:   (O, 1)         final 1x1 conv bias
    mask_ref: (2, L)         0/1 masks: row 0 kills w==0 cols, row 1 kills w==W-1
    out_ref:  (1, O, L)
    """
    band = pl.program_id(1)
    nband = pl.num_programs(1)
    cin = x_ref.shape[1]
    npix = x_ref.shape[2]
    halo = xtop_ref.shape[2]

    x = x_ref[0]                      # (Cin, L)
    taps = dw_ref[...]                # (9, Cin, 1)
    mask_l = mask_ref[0:1, :]         # (1, L)
    mask_r = mask_ref[1:2, :]         # (1, L)

    # Row halo: the W pixels directly above / below this band (zero at the
    # image border -> same as Conv2d's zero padding).
    top_ok = (band > 0).astype(jnp.float32)
    bot_ok = (band < nband - 1).astype(jnp.float32)
    prev_row = xtop_ref[0][:, halo - img_w:] * top_ok     # (Cin, W)
    next_row = xbot_ref[0][:, :img_w] * bot_ok            # (Cin, W)

    # Whole-row shifts: position p holds the pixel at p -+ W (one row up/down).
    x_up = jnp.concatenate([prev_row, x[:, :npix - img_w]], axis=1)
    x_dn = jnp.concatenate([x[:, img_w:], next_row], axis=1)

    zero_col = jnp.zeros((cin, 1), jnp.float32)

    def left_nbr(a):   # value at column w-1 (wrapped value at w==0 is masked)
        return jnp.concatenate([zero_col, a[:, :npix - 1]], axis=1)

    def right_nbr(a):  # value at column w+1 (wrapped value at w==W-1 is masked)
        return jnp.concatenate([a[:, 1:], zero_col], axis=1)

    # Depthwise 3x3 (cross-correlation, like nn.Conv2d), f32 accumulation on
    # the VPU with every lane doing useful work.
    acc = taps[4] * x
    for kh, row in ((0, x_up), (1, x), (2, x_dn)):
        if kh != 1:
            acc = acc + taps[kh * 3 + 1] * row
        acc = acc + taps[kh * 3 + 0] * (left_nbr(row) * mask_l)
        acc = acc + taps[kh * 3 + 2] * (right_nbr(row) * mask_r)

    # Pointwise 1x1 conv with BatchNorm folded in, then ReLU. MXU matmul with
    # lane-dense N = pixels even though Cin/Cmid are small.
    y = jnp.dot(pw_ref[...], acc, preferred_element_type=jnp.float32)
    y = jnp.maximum(y + bsh_ref[...], 0.0)

    # Final 1x1 conv with bias; the (O, L) result stores lane-dense.
    z = jnp.dot(fw_ref[...], y, preferred_element_type=jnp.float32) + fb_ref[...]
    out_ref[0] = z


def _pick_tile_rows(h, w, widest_chan, budget_bytes=2 * 1024 * 1024):
    """Rows per band.  Multi-band tiling needs H % rows == 0 and a 128-aligned
    flattened band (rows*W % 128 == 0, W <= 128 or W % 128 == 0) so the halo
    blocks line up; rows == H (single band) is always legal."""
    cands = []
    for th in range(1, h + 1):
        if h % th:
            continue
        if th == h or ((th * w) % 128 == 0 and (w <= 128 or w % 128 == 0)):
            cands.append(th)
    fitting = [t for t in cands if t * w * widest_chan * 4 <= budget_bytes]
    return max(fitting) if fitting else min(cands)


def sep_conv_head(x_nchw, params, *, tile_h=None):
    """SepConvHead forward.  x_nchw: (N, Cin, H, W) f32 -> (N, num_outputs, H, W)."""
    n, cin, h, w = x_nchw.shape
    dw = params["dw"]                        # (9, Cin, 1)
    pw = params["pw"]                        # (Cmid, Cin)
    fw = params["fw"]                        # (O, Cmid)
    fb = params["fb"]                        # (O, 1)
    cmid = pw.shape[0]
    o = fw.shape[0]

    # Fold inference BatchNorm into the pointwise conv:  s*(Wx) + t == (sW)x + t.
    bn_scale = params["gamma"] / jnp.sqrt(params["var"] + params["eps"])   # (Cmid,)
    pw_fold = (pw * bn_scale[:, None]).astype(jnp.float32)                 # (Cmid, Cin)
    bn_shift = ((params["beta"] - params["mean"] * bn_scale)[:, None]
                ).astype(jnp.float32)                                      # (Cmid, 1)

    if tile_h is None:
        tile_h = _pick_tile_rows(h, w, max(cin, cmid, o))
    assert h % tile_h == 0, "tile_h must divide H"
    if tile_h != h:
        assert (tile_h * w) % 128 == 0 and (w <= 128 or w % 128 == 0), \
            "multi-band tiling needs a 128-aligned band; use tile_h=H instead"

    nband = h // tile_h
    npix = tile_h * w                    # flattened pixels per band (lane axis)
    if tile_h == h:
        halo = npix                      # single band: halo blocks never used
    elif w % 128 == 0:
        halo = w
    else:
        halo = 128
    rb = npix // halo                    # halo blocks per band
    nhb = (h * w) // halo                # halo blocks per image

    # NCHW stays in place; only a free (contiguous) reshape flattens H*W.
    x_flat = x_nchw.reshape(n, cin, h * w).astype(jnp.float32)

    # Column-edge masks (w == 0 / w == W-1); band-invariant because every band
    # is a whole number of rows.
    col = jnp.arange(npix) % w
    masks = jnp.stack([col != 0, col != w - 1]).astype(jnp.float32)   # (2, L)

    flops = 2 * n * h * w * (9 * cin + cin * cmid + cmid * o)
    bytes_accessed = 4 * (n * cin * h * w + n * o * h * w
                          + 9 * cin + cin * cmid + 2 * cmid + cmid * o + 2 * o
                          + 2 * npix)

    out_flat = pl.pallas_call(
        partial(_sep_conv_head_kernel, img_w=w),
        out_shape=jax.ShapeDtypeStruct((n, o, h * w), jnp.float32),
        grid=(n, nband),
        in_specs=[
            pl.BlockSpec((1, cin, npix), lambda b, i: (b, 0, i)),
            pl.BlockSpec((1, cin, halo),
                         lambda b, i: (b, 0, jnp.maximum(i * rb - 1, 0))),
            pl.BlockSpec((1, cin, halo),
                         lambda b, i: (b, 0, jnp.minimum((i + 1) * rb, nhb - 1))),
            pl.BlockSpec((9, cin, 1), lambda b, i: (0, 0, 0)),
            pl.BlockSpec((cmid, cin), lambda b, i: (0, 0)),
            pl.BlockSpec((cmid, 1), lambda b, i: (0, 0)),
            pl.BlockSpec((o, cmid), lambda b, i: (0, 0)),
            pl.BlockSpec((o, 1), lambda b, i: (0, 0)),
            pl.BlockSpec((2, npix), lambda b, i: (0, 0)),
        ],
        out_specs=pl.BlockSpec((1, o, npix), lambda b, i: (b, 0, i)),
        compiler_params=pltpu.CompilerParams(
            dimension_semantics=("parallel", "parallel"),
            vmem_limit_bytes=64 * 1024 * 1024),
        cost_estimate=pl.CostEstimate(flops=flops, transcendentals=0,
                                      bytes_accessed=bytes_accessed),
    )(x_flat, x_flat, x_flat, dw, pw_fold, bn_shift, fw, fb, masks)

    return out_flat.reshape(n, o, h, w)


def make_params(key, in_channels, out_channels, num_outputs):
    """Deterministic synthetic parameters mirroring the PyTorch module shapes."""
    ks = jax.random.split(key, 8)
    # depthwise Conv2d(in, in, 3, groups=in): weight (in, 1, 3, 3)
    dw_torch = jax.random.normal(ks[0], (in_channels, 1, 3, 3), jnp.float32) * 0.1
    # pointwise Conv2d(in, out, 1): weight (out, in, 1, 1)
    pw_torch = jax.random.normal(ks[1], (out_channels, in_channels, 1, 1), jnp.float32) * 0.1
    # BatchNorm2d(out): gamma, beta, running_mean, running_var
    gamma = 1.0 + 0.1 * jax.random.normal(ks[2], (out_channels,), jnp.float32)
    beta = 0.1 * jax.random.normal(ks[3], (out_channels,), jnp.float32)
    running_mean = 0.1 * jax.random.normal(ks[4], (out_channels,), jnp.float32)
    running_var = jnp.abs(jax.random.normal(ks[5], (out_channels,), jnp.float32)) + 0.5
    # final Conv2d(out, num_outputs, 1) with bias=True (PyTorch default)
    fw_torch = jax.random.normal(ks[6], (num_outputs, out_channels, 1, 1), jnp.float32) * 0.1
    fb_torch = jax.random.normal(ks[7], (num_outputs,), jnp.float32) * 0.1

    return {
        # (9, Cin, 1), tap t = kh*3 + kw, value = torch_weight[c, 0, kh, kw]
        "dw": jnp.transpose(dw_torch[:, 0], (1, 2, 0)).reshape(9, in_channels)[:, :, None],
        "pw": pw_torch[:, :, 0, 0],          # (Cmid, Cin)
        "gamma": gamma, "beta": beta,
        "mean": running_mean, "var": running_var, "eps": 1e-5,
        "fw": fw_torch[:, :, 0, 0],          # (O, Cmid)
        "fb": fb_torch[:, None],             # (O, 1)
    }


def reference_forward(x_nchw, params):
    """Pure-JAX/XLA reference of the same forward pass (un-folded BatchNorm)."""
    cin = x_nchw.shape[1]
    dw = params["dw"][:, :, 0]                       # (9, Cin)
    w_hwio = dw.reshape(3, 3, cin)[:, :, None, :]    # (3, 3, 1, Cin), I = Cin/groups = 1
    y = lax.conv_general_dilated(
        x_nchw, w_hwio, window_strides=(1, 1), padding="SAME",
        dimension_numbers=("NCHW", "HWIO", "NCHW"),
        feature_group_count=cin)
    y = jnp.einsum("mc,nchw->nmhw", params["pw"], y)
    scale = params["gamma"] / jnp.sqrt(params["var"] + params["eps"])
    y = (y - params["mean"].reshape(1, -1, 1, 1)) * scale.reshape(1, -1, 1, 1) \
        + params["beta"].reshape(1, -1, 1, 1)
    y = jnp.maximum(y, 0.0)
    z = jnp.einsum("om,nmhw->nohw", params["fw"], y) + params["fb"].reshape(1, -1, 1, 1)
    return z


if __name__ == "__main__":
    N, Cin, H, W = 2, 4, 16, 16
    out_channels = 8
    num_outputs = 3

    key = jax.random.PRNGKey(0)
    kx, kp = jax.random.split(key)
    x = jax.random.normal(kx, (N, Cin, H, W), jnp.float32)
    params = make_params(kp, Cin, out_channels, num_outputs)

    # tile_h=8 -> 2 row-bands per image, exercising the multi-band halo path.
    out = sep_conv_head(x, params, tile_h=8)
    out = jax.block_until_ready(out)

    ref = reference_forward(x, params)
    assert out.shape == (N, num_outputs, H, W)
    assert jnp.allclose(out, ref, atol=1e-4, rtol=1e-4), "mismatch vs reference"

    print("KERNEL_OK")
</pallas_src>

<mosaic_0001>
module attributes {stable_mosaic.version = 11 : i64} {
  func.func @_sep_conv_head_kernel(%arg0: i32, %arg1: i32, %arg2: memref<1x4x128xf32, #tpu.memory_space<vmem>>, %arg3: memref<1x4x128xf32, #tpu.memory_space<vmem>>, %arg4: memref<1x4x128xf32, #tpu.memory_space<vmem>>, %arg5: memref<9x4x1xf32, #tpu.memory_space<vmem>>, %arg6: memref<8x4xf32, #tpu.memory_space<vmem>>, %arg7: memref<8x1xf32, #tpu.memory_space<vmem>>, %arg8: memref<3x8xf32, #tpu.memory_space<vmem>>, %arg9: memref<3x1xf32, #tpu.memory_space<vmem>>, %arg10: memref<2x128xf32, #tpu.memory_space<vmem>>, %arg11: memref<1x3x128xf32, #tpu.memory_space<vmem>>) attributes {dimension_semantics = [#tpu.dimension_semantics<parallel>, #tpu.dimension_semantics<parallel>], iteration_bounds = array<i64: 2, 2>, scalar_prefetch = 0 : i64, scratch_operands = 0 : i64, tpu.core_type = #tpu.core_type<tc>, window_params = [{transform_indices = @transform_0, window_bounds = array<i64: 1, 4, 128>}, {transform_indices = @transform_1, window_bounds = array<i64: 1, 4, 128>}, {transform_indices = @transform_2, window_bounds = array<i64: 1, 4, 128>}, {pipeline_mode = #tpu.pipeline_mode<synchronous>, transform_indices = @transform_3, window_bounds = array<i64: 9, 4, 1>}, {pipeline_mode = #tpu.pipeline_mode<synchronous>, transform_indices = @transform_4, window_bounds = array<i64: 8, 4>}, {pipeline_mode = #tpu.pipeline_mode<synchronous>, transform_indices = @transform_5, window_bounds = array<i64: 8, 1>}, {pipeline_mode = #tpu.pipeline_mode<synchronous>, transform_indices = @transform_6, window_bounds = array<i64: 3, 8>}, {pipeline_mode = #tpu.pipeline_mode<synchronous>, transform_indices = @transform_7, window_bounds = array<i64: 3, 1>}, {pipeline_mode = #tpu.pipeline_mode<synchronous>, transform_indices = @transform_8, window_bounds = array<i64: 2, 128>}, {transform_indices = @transform_9, window_bounds = array<i64: 1, 3, 128>}]} {
    %c0 = arith.constant 0 : index
    %c0_0 = arith.constant 0 : index
    %c0_1 = arith.constant 0 : index
    %0 = vector.load %arg2[%c0, %c0_0, %c0_1] : memref<1x4x128xf32, #tpu.memory_space<vmem>>, vector<1x4x128xf32>
    %1 = vector.shape_cast %0 : vector<1x4x128xf32> to vector<4x128xf32>
    %c0_2 = arith.constant 0 : index
    %c0_3 = arith.constant 0 : index
    %c0_4 = arith.constant 0 : index
    %2 = vector.load %arg5[%c0_2, %c0_3, %c0_4] : memref<9x4x1xf32, #tpu.memory_space<vmem>>, vector<9x4x1xf32>
    %c0_5 = arith.constant 0 : index
    %c0_6 = arith.constant 0 : index
    %3 = vector.load %arg10[%c0_5, %c0_6] : memref<2x128xf32, #tpu.memory_space<vmem>>, vector<1x128xf32>
    %c1 = arith.constant 1 : index
    %c0_7 = arith.constant 0 : index
    %4 = vector.load %arg10[%c1, %c0_7] : memref<2x128xf32, #tpu.memory_space<vmem>>, vector<1x128xf32>
    %c0_i32 = arith.constant 0 : i32
    %5 = arith.cmpi sgt, %arg1, %c0_i32 : i32
    %6 = arith.extui %5 : i1 to i32
    %7 = arith.sitofp %6 : i32 to f32
    %c1_i32 = arith.constant 1 : i32
    %8 = arith.cmpi slt, %arg1, %c1_i32 : i32
    %9 = arith.extui %8 : i1 to i32
    %10 = arith.sitofp %9 : i32 to f32
    %c0_8 = arith.constant 0 : index
    %c0_9 = arith.constant 0 : index
    %c0_10 = arith.constant 0 : index
    %11 = vector.load %arg3[%c0_8, %c0_9, %c0_10] : memref<1x4x128xf32, #tpu.memory_space<vmem>>, vector<1x4x128xf32>
    %12 = vector.shape_cast %11 : vector<1x4x128xf32> to vector<4x128xf32>
    %13 = vector.extract_strided_slice %12 {offsets = [0, 112], sizes = [4, 16], strides = [1, 1]} : vector<4x128xf32> to vector<4x16xf32>
    %14 = vector.broadcast %7 : f32 to vector<4x16xf32>
    %15 = arith.mulf %13, %14 : vector<4x16xf32>
    %c0_11 = arith.constant 0 : index
    %c0_12 = arith.constant 0 : index
    %c0_13 = arith.constant 0 : index
    %16 = vector.load %arg4[%c0_11, %c0_12, %c0_13] : memref<1x4x128xf32, #tpu.memory_space<vmem>>, vector<1x4x128xf32>
    %17 = vector.shape_cast %16 : vector<1x4x128xf32> to vector<4x128xf32>
    %18 = vector.extract_strided_slice %17 {offsets = [0, 0], sizes = [4, 16], strides = [1, 1]} : vector<4x128xf32> to vector<4x16xf32>
    %19 = vector.broadcast %10 : f32 to vector<4x16xf32>
    %20 = arith.mulf %18, %19 : vector<4x16xf32>
    %21 = vector.extract_strided_slice %1 {offsets = [0, 0], sizes = [4, 112], strides = [1, 1]} : vector<4x128xf32> to vector<4x112xf32>
    %22 = tpu.concatenate %15, %21 in 1 : vector<4x16xf32>, vector<4x112xf32> -> vector<4x128xf32>
    %23 = vector.extract_strided_slice %1 {offsets = [0, 16], sizes = [4, 112], strides = [1, 1]} : vector<4x128xf32> to vector<4x112xf32>
    %24 = tpu.concatenate %23, %20 in 1 : vector<4x112xf32>, vector<4x16xf32> -> vector<4x128xf32>
    %cst = arith.constant 0.000000e+00 : f32
    %25 = vector.broadcast %cst : f32 to vector<4x1xf32>
    %26 = vector.extract_strided_slice %2 {offsets = [4, 0, 0], sizes = [1, 4, 1], strides = [1, 1, 1]} : vector<9x4x1xf32> to vector<1x4x1xf32>
    %27 = vector.shape_cast %26 : vector<1x4x1xf32> to vector<4x1xf32>
    %28 = vector.broadcast %27 : vector<4x1xf32> to vector<4x128xf32>
    %29 = arith.mulf %28, %1 : vector<4x128xf32>
    %30 = vector.extract_strided_slice %2 {offsets = [1, 0, 0], sizes = [1, 4, 1], strides = [1, 1, 1]} : vector<9x4x1xf32> to vector<1x4x1xf32>
    %31 = vector.shape_cast %30 : vector<1x4x1xf32> to vector<4x1xf32>
    %32 = vector.broadcast %31 : vector<4x1xf32> to vector<4x128xf32>
    %33 = arith.mulf %32, %22 : vector<4x128xf32>
    %34 = arith.addf %29, %33 : vector<4x128xf32>
    %35 = vector.extract_strided_slice %2 {offsets = [0, 0, 0], sizes = [1, 4, 1], strides = [1, 1, 1]} : vector<9x4x1xf32> to vector<1x4x1xf32>
    %36 = vector.shape_cast %35 : vector<1x4x1xf32> to vector<4x1xf32>
    %37 = vector.extract_strided_slice %22 {offsets = [0, 0], sizes = [4, 127], strides = [1, 1]} : vector<4x128xf32> to vector<4x127xf32>
    %38 = tpu.concatenate %25, %37 in 1 : vector<4x1xf32>, vector<4x127xf32> -> vector<4x128xf32>
    %39 = vector.broadcast %3 : vector<1x128xf32> to vector<4x128xf32>
    %40 = arith.mulf %38, %39 : vector<4x128xf32>
    %41 = vector.broadcast %36 : vector<4x1xf32> to vector<4x128xf32>
    %42 = arith.mulf %41, %40 : vector<4x128xf32>
    %43 = arith.addf %34, %42 : vector<4x128xf32>
    %44 = vector.extract_strided_slice %2 {offsets = [2, 0, 0], sizes = [1, 4, 1], strides = [1, 1, 1]} : vector<9x4x1xf32> to vector<1x4x1xf32>
    %45 = vector.shape_cast %44 : vector<1x4x1xf32> to vector<4x1xf32>
    %46 = vector.extract_strided_slice %22 {offsets = [0, 1], sizes = [4, 127], strides = [1, 1]} : vector<4x128xf32> to vector<4x127xf32>
    %47 = tpu.concatenate %46, %25 in 1 : vector<4x127xf32>, vector<4x1xf32> -> vector<4x128xf32>
    %48 = vector.broadcast %4 : vector<1x128xf32> to vector<4x128xf32>
    %49 = arith.mulf %47, %48 : vector<4x128xf32>
    %50 = vector.broadcast %45 : vector<4x1xf32> to vector<4x128xf32>
    %51 = arith.mulf %50, %49 : vector<4x128xf32>
    %52 = arith.addf %43, %51 : vector<4x128xf32>
    %53 = vector.extract_strided_slice %2 {offsets = [3, 0, 0], sizes = [1, 4, 1], strides = [1, 1, 1]} : vector<9x4x1xf32> to vector<1x4x1xf32>
    %54 = vector.shape_cast %53 : vector<1x4x1xf32> to vector<4x1xf32>
    %55 = vector.extract_strided_slice %1 {offsets = [0, 0], sizes = [4, 127], strides = [1, 1]} : vector<4x128xf32> to vector<4x127xf32>
    %56 = tpu.concatenate %25, %55 in 1 : vector<4x1xf32>, vector<4x127xf32> -> vector<4x128xf32>
    %57 = vector.broadcast %3 : vector<1x128xf32> to vector<4x128xf32>
    %58 = arith.mulf %56, %57 : vector<4x128xf32>
    %59 = vector.broadcast %54 : vector<4x1xf32> to vector<4x128xf32>
    %60 = arith.mulf %59, %58 : vector<4x128xf32>
    %61 = arith.addf %52, %60 : vector<4x128xf32>
    %62 = vector.extract_strided_slice %2 {offsets = [5, 0, 0], sizes = [1, 4, 1], strides = [1, 1, 1]} : vector<9x4x1xf32> to vector<1x4x1xf32>
    %63 = vector.shape_cast %62 : vector<1x4x1xf32> to vector<4x1xf32>
    %64 = vector.extract_strided_slice %1 {offsets = [0, 1], sizes = [4, 127], strides = [1, 1]} : vector<4x128xf32> to vector<4x127xf32>
    %65 = tpu.concatenate %64, %25 in 1 : vector<4x127xf32>, vector<4x1xf32> -> vector<4x128xf32>
    %66 = vector.broadcast %4 : vector<1x128xf32> to vector<4x128xf32>
    %67 = arith.mulf %65, %66 : vector<4x128xf32>
    %68 = vector.broadcast %63 : vector<4x1xf32> to vector<4x128xf32>
    %69 = arith.mulf %68, %67 : vector<4x128xf32>
    %70 = arith.addf %61, %69 : vector<4x128xf32>
    %71 = vector.extract_strided_slice %2 {offsets = [7, 0, 0], sizes = [1, 4, 1], strides = [1, 1, 1]} : vector<9x4x1xf32> to vector<1x4x1xf32>
    %72 = vector.shape_cast %71 : vector<1x4x1xf32> to vector<4x1xf32>
    %73 = vector.broadcast %72 : vector<4x1xf32> to vector<4x128xf32>
    %74 = arith.mulf %73, %24 : vector<4x128xf32>
    %75 = arith.addf %70, %74 : vector<4x128xf32>
    %76 = vector.extract_strided_slice %2 {offsets = [6, 0, 0], sizes = [1, 4, 1], strides = [1, 1, 1]} : vector<9x4x1xf32> to vector<1x4x1xf32>
    %77 = vector.shape_cast %76 : vector<1x4x1xf32> to vector<4x1xf32>
    %78 = vector.extract_strided_slice %24 {offsets = [0, 0], sizes = [4, 127], strides = [1, 1]} : vector<4x128xf32> to vector<4x127xf32>
    %79 = tpu.concatenate %25, %78 in 1 : vector<4x1xf32>, vector<4x127xf32> -> vector<4x128xf32>
    %80 = vector.broadcast %3 : vector<1x128xf32> to vector<4x128xf32>
    %81 = arith.mulf %79, %80 : vector<4x128xf32>
    %82 = vector.broadcast %77 : vector<4x1xf32> to vector<4x128xf32>
    %83 = arith.mulf %82, %81 : vector<4x128xf32>
    %84 = arith.addf %75, %83 : vector<4x128xf32>
    %85 = vector.extract_strided_slice %2 {offsets = [8, 0, 0], sizes = [1, 4, 1], strides = [1, 1, 1]} : vector<9x4x1xf32> to vector<1x4x1xf32>
    %86 = vector.shape_cast %85 : vector<1x4x1xf32> to vector<4x1xf32>
    %87 = vector.extract_strided_slice %24 {offsets = [0, 1], sizes = [4, 127], strides = [1, 1]} : vector<4x128xf32> to vector<4x127xf32>
    %88 = tpu.concatenate %87, %25 in 1 : vector<4x127xf32>, vector<4x1xf32> -> vector<4x128xf32>
    %89 = vector.broadcast %4 : vector<1x128xf32> to vector<4x128xf32>
    %90 = arith.mulf %88, %89 : vector<4x128xf32>
    %91 = vector.broadcast %86 : vector<4x1xf32> to vector<4x128xf32>
    %92 = arith.mulf %91, %90 : vector<4x128xf32>
    %93 = arith.addf %84, %92 : vector<4x128xf32>
    %c0_14 = arith.constant 0 : index
    %c0_15 = arith.constant 0 : index
    %94 = vector.load %arg6[%c0_14, %c0_15] : memref<8x4xf32, #tpu.memory_space<vmem>>, vector<8x4xf32>
    %cst_16 = arith.constant dense<0.000000e+00> : vector<8x128xf32>
    %95 = tpu.matmul %94, %93, %cst_16 {dimension_numbers = #tpu.dot_dimension_numbers<[1], [0], [0], [1], [0, 0, 1, 1], [], []>} : vector<8x4xf32>, vector<4x128xf32>, vector<8x128xf32> -> vector<8x128xf32>
    %c0_17 = arith.constant 0 : index
    %c0_18 = arith.constant 0 : index
    %96 = vector.load %arg7[%c0_17, %c0_18] : memref<8x1xf32, #tpu.memory_space<vmem>>, vector<8x1xf32>
    %97 = vector.broadcast %96 : vector<8x1xf32> to vector<8x128xf32>
    %98 = arith.addf %95, %97 : vector<8x128xf32>
    %cst_19 = arith.constant 0.000000e+00 : f32
    %99 = vector.broadcast %cst_19 : f32 to vector<8x128xf32>
    %100 = arith.maximumf %98, %99 : vector<8x128xf32>
    %c0_20 = arith.constant 0 : index
    %c0_21 = arith.constant 0 : index
    %101 = vector.load %arg8[%c0_20, %c0_21] : memref<3x8xf32, #tpu.memory_space<vmem>>, vector<3x8xf32>
    %cst_22 = arith.constant dense<0.000000e+00> : vector<3x128xf32>
    %102 = tpu.matmul %101, %100, %cst_22 {dimension_numbers = #tpu.dot_dimension_numbers<[1], [0], [0], [1], [0, 0, 1, 1], [], []>} : vector<3x8xf32>, vector<8x128xf32>, vector<3x128xf32> -> vector<3x128xf32>
    %c0_23 = arith.constant 0 : index
    %c0_24 = arith.constant 0 : index
    %103 = vector.load %arg9[%c0_23, %c0_24] : memref<3x1xf32, #tpu.memory_space<vmem>>, vector<3x1xf32>
    %104 = vector.broadcast %103 : vector<3x1xf32> to vector<3x128xf32>
    %105 = arith.addf %102, %104 : vector<3x128xf32>
    %c0_25 = arith.constant 0 : index
    %c0_26 = arith.constant 0 : index
    %c0_27 = arith.constant 0 : index
    %106 = vector.load %arg11[%c0_25, %c0_26, %c0_27] : memref<1x3x128xf32, #tpu.memory_space<vmem>>, vector<1x3x128xf32>
    %107 = vector.shape_cast %106 : vector<1x3x128xf32> to vector<3x128xf32>
    %108 = vector.shape_cast %105 : vector<3x128xf32> to vector<1x3x128xf32>
    tpu.vector_store %arg11[%c0_25, %c0_26, %c0_27], %108 {strides = array<i32>} : memref<1x3x128xf32, #tpu.memory_space<vmem>>, vector<1x3x128xf32>,
    return
  }
  func.func @transform_0(%arg0: i32, %arg1: i32) -> (i32, i32, i32) {
    %c0_i32 = arith.constant 0 : i32
    %c0_i32_0 = arith.constant 0 : i32
    return %arg0, %c0_i32, %arg1 : i32, i32, i32
  }
  func.func @transform_1(%arg0: i32, %arg1: i32) -> (i32, i32, i32) {
    %c1_i32 = arith.constant 1 : i32
    %0 = arith.muli %arg1, %c1_i32 : i32
    %c1_i32_0 = arith.constant 1 : i32
    %1 = arith.subi %0, %c1_i32_0 : i32
    %c0_i32 = arith.constant 0 : i32
    %2 = arith.maxsi %1, %c0_i32 : i32
    %c0_i32_1 = arith.constant 0 : i32
    %c0_i32_2 = arith.constant 0 : i32
    return %arg0, %c0_i32_1, %2 : i32, i32, i32
  }
  func.func @transform_2(%arg0: i32, %arg1: i32) -> (i32, i32, i32) {
    %c1_i32 = arith.constant 1 : i32
    %0 = arith.addi %arg1, %c1_i32 : i32
    %c1_i32_0 = arith.constant 1 : i32
    %1 = arith.muli %0, %c1_i32_0 : i32
    %c1_i32_1 = arith.constant 1 : i32
    %2 = arith.minsi %1, %c1_i32_1 : i32
    %c0_i32 = arith.constant 0 : i32
    %c0_i32_2 = arith.constant 0 : i32
    return %arg0, %c0_i32, %2 : i32, i32, i32
  }
  func.func @transform_3(%arg0: i32, %arg1: i32) -> (i32, i32, i32) {
    %c0_i32 = arith.constant 0 : i32
    %c0_i32_0 = arith.constant 0 : i32
    %c0_i32_1 = arith.constant 0 : i32
    %c0_i32_2 = arith.constant 0 : i32
    return %c0_i32, %c0_i32_0, %c0_i32_1 : i32, i32, i32
  }
  func.func @transform_4(%arg0: i32, %arg1: i32) -> (i32, i32) {
    %c0_i32 = arith.constant 0 : i32
    %c0_i32_0 = arith.constant 0 : i32
    %c0_i32_1 = arith.constant 0 : i32
    return %c0_i32, %c0_i32_0 : i32, i32
  }
  func.func @transform_5(%arg0: i32, %arg1: i32) -> (i32, i32) {
    %c0_i32 = arith.constant 0 : i32
    %c0_i32_0 = arith.constant 0 : i32
    %c0_i32_1 = arith.constant 0 : i32
    return %c0_i32, %c0_i32_0 : i32, i32
  }
  func.func @transform_6(%arg0: i32, %arg1: i32) -> (i32, i32) {
    %c0_i32 = arith.constant 0 : i32
    %c0_i32_0 = arith.constant 0 : i32
    %c0_i32_1 = arith.constant 0 : i32
    return %c0_i32, %c0_i32_0 : i32, i32
  }
  func.func @transform_7(%arg0: i32, %arg1: i32) -> (i32, i32) {
    %c0_i32 = arith.constant 0 : i32
    %c0_i32_0 = arith.constant 0 : i32
    %c0_i32_1 = arith.constant 0 : i32
    return %c0_i32, %c0_i32_0 : i32, i32
  }
  func.func @transform_8(%arg0: i32, %arg1: i32) -> (i32, i32) {
    %c0_i32 = arith.constant 0 : i32
    %c0_i32_0 = arith.constant 0 : i32
    %c0_i32_1 = arith.constant 0 : i32
    return %c0_i32, %c0_i32_0 : i32, i32
  }
  func.func @transform_9(%arg0: i32, %arg1: i32) -> (i32, i32, i32) {
    %c0_i32 = arith.constant 0 : i32
    %c0_i32_0 = arith.constant 0 : i32
    return %arg0, %c0_i32, %arg1 : i32, i32, i32
  }
}

</mosaic_0001>

<llo_original>
// kernel: tpu_custom_call.1
$region0: #{tpu_custom_call.1}
  #allocation0 [shape = 'u32[]', space=smem, size = 0x4, offset = 0x4, fixed_abs, tag = 'smem constant byte address 0x4 - core index']
  #allocation1 [shape = 'u32[144,128]{1,0:T(1,128)}', space=vmem, size = 0x12000, scoped, tag = 'internal scratch']
  %s0 = inlined_call_operand.hbm [shape: f32[2,4,256], index: 0, kind: input, shape index: {}]
  %s1 = inlined_call_operand.hbm [shape: f32[2,4,256], index: 1, kind: input, shape index: {}]
  %s2 = inlined_call_operand.hbm [shape: f32[2,4,256], index: 2, kind: input, shape index: {}]
  %s3 = inlined_call_operand.hbm [shape: f32[9,4,1], index: 3, kind: input, shape index: {}]
  %s4 = inlined_call_operand.hbm [shape: f32[8,4], index: 4, kind: input, shape index: {}]
  %s5 = inlined_call_operand.hbm [shape: f32[8,1], index: 5, kind: input, shape index: {}]
  %s6 = inlined_call_operand.hbm [shape: f32[3,8], index: 6, kind: input, shape index: {}]
  %s7 = inlined_call_operand.hbm [shape: f32[3,1], index: 7, kind: input, shape index: {}]
  %s8 = inlined_call_operand.hbm [shape: f32[2,128], index: 8, kind: input, shape index: {}]
  %s9 = inlined_call_operand.hbm [shape: f32[2,3,256], index: 9, kind: output, shape index: {}]
  %s10 = sld [smem:[#allocation0]]
  $region105: #{tpu_custom_call.1} parent=0
    _
  %s12 = ssub.s32 1, %s10
  %s13 = scalar_select 0, %s12, %s10
  $region1: #{tpu_custom_call.1} parent=0
    #allocation2 [shape = 'u8[4096]{0}', space=vmem, size = 0x1000, scoped, tag = 'input window, operand 0']
    #allocation3 [shape = 's32[2]{0}', space=sflag, size = 0x8, scoped, tag = 'scoped memory for tpu_custom_call.1']
    #allocation4 [shape = 's32[2]{0}', space=sflag, size = 0x8, scoped, tag = 'scoped memory for tpu_custom_call.1']
    #allocation5 [shape = 'u8[4096]{0}', space=vmem, size = 0x1000, scoped, tag = 'input window, operand 1']
    #allocation6 [shape = 's32[2]{0}', space=sflag, size = 0x8, scoped, tag = 'scoped memory for tpu_custom_call.1']
    #allocation7 [shape = 'u8[4096]{0}', space=vmem, size = 0x1000, scoped, tag = 'input window, operand 2']
    #allocation8 [shape = 'u8[18432]{0}', space=vmem, size = 0x4800, scoped, tag = 'input window, operand 3, single buffered']
    #allocation9 [shape = 's32[1]{0}', space=sflag, size = 0x4, scoped, tag = 'scoped memory for tpu_custom_call.1']
    #allocation10 [shape = 'u8[4096]{0}', space=vmem, size = 0x1000, scoped, tag = 'input window, operand 4, single buffered']
    #allocation11 [shape = 'u8[4096]{0}', space=vmem, size = 0x1000, scoped, tag = 'input window, operand 5, single buffered']
    #allocation12 [shape = 's32[1]{0}', space=sflag, size = 0x4, scoped, tag = 'scoped memory for tpu_custom_call.1']
    #allocation13 [shape = 'u8[2048]{0}', space=vmem, size = 0x800, scoped, tag = 'input window, operand 6, single buffered']
    #allocation14 [shape = 'u8[2048]{0}', space=vmem, size = 0x800, scoped, tag = 'input window, operand 7, single buffered']
    #allocation15 [shape = 's32[1]{0}', space=sflag, size = 0x4, scoped, tag = 'scoped memory for tpu_custom_call.1']
    #allocation16 [shape = 'u8[1024]{0}', space=vmem, size = 0x400, scoped, tag = 'input window, operand 8, single buffered']
    #allocation17 [shape = 'u8[4096]{0}', space=vmem, size = 0x1000, scoped, tag = 'output window, operand 0']
    %14 = vsyncpa [#allocation3], 0
    %s15 = scalar_lea.sflag [#allocation3], 1
    %16 = vsyncpa %s15, 0
    %17 = vsyncpa [#allocation6], 0
    %s18 = scalar_lea.sflag [#allocation6], 1
    %19 = vsyncpa %s18, 0
    %20 = vsyncpa [#allocation9], 0
    %21 = vsyncpa [#allocation12], 0
    %22 = vsyncpa [#allocation15], 0
    %23 = vsyncpa [#allocation4], 0
    %s24 = scalar_lea.sflag [#allocation4], 1
    %25 = vsyncpa %s24, 0
    loop: start=0, step=1, limit=6
    $region2: #{tpu_custom_call.1} parent=1 // loop_pre_header
      _
    $region3: #{tpu_custom_call.1} parent=1 // loop_header
      %s27 = sphi 0, %s31
      %p28 = scmp.ge.s32.totalorder %s27, 6
      %s34 = sphi 0, %s46
      %s35 = sphi 0, %s42
      %s36 = sphi 0, %s34
      %s37 = sphi 0, %s35
      %s38 = sphi 0, %s36
      %s39 = sphi 0, %s37
      %s51 = sphi 0, %s53
      %s54 = sphi 0, %s51
      %s55 = sphi 0, %s54
      %s71 = sphi 0, %s55
      %s85 = sphi 0, %s87
      %s88 = sphi 0, %s85
      %s89 = sphi 0, %s88
      %s105 = sphi 0, %s89
      %s119 = sphi 0, %s121
      %s122 = sphi 0, %s119
      %s123 = sphi 0, %s122
      %s139 = sphi 0, %s123
      %s143 = sphi 0, %s143
      %s145 = sphi 0, %s143
      %s146 = sphi 0, %s145
      %s160 = sphi 0, %s146
      %s164 = sphi 0, %s164
      %s166 = sphi 0, %s164
      %s167 = sphi 0, %s166
      %s181 = sphi 0, %s167
      %s185 = sphi 0, %s185
      %s187 = sphi 0, %s185
      %s188 = sphi 0, %s187
      %s202 = sphi 0, %s188
      %s206 = sphi 0, %s206
      %s208 = sphi 0, %s206
      %s209 = sphi 0, %s208
      %s223 = sphi 0, %s209
      %s227 = sphi 0, %s227
      %s229 = sphi 0, %s227
      %s230 = sphi 0, %s229
      %s244 = sphi 0, %s230
      %s248 = sphi 0, %s248
      %s250 = sphi 0, %s248
      %s251 = sphi 0, %s250
      %s265 = sphi 0, %s251
      %s273 = sphi 0, %s275
      %s276 = sphi 0, %s273
      %s277 = sphi 0, %s276
      %s293 = sphi 0, %s277
    $region4: #{tpu_custom_call.1} parent=1 // loop_header_branch
      %30 = sbr.rel (%p28) target = $region8
    $region5: #{tpu_custom_call.1} parent=1 // loop_body
      %s32 = ssub.s32 %s27, 1
      %s33 = ssub.s32 %s27, 2
      %s40 = sadd.s32 1, %s35
      %p41 = scmp.ge.s32.totalorder %s40, 2
      %s42 = scalar_select %p41, 0, %s40
      %s43 = sadd.s32 1, %s34
      %s44 = scalar_select %p41, %s43, %s34
      %p45 = scmp.ge.s32.totalorder %s44, 2
      %s46 = scalar_select %p45, 0, %s44
      %s47 = ssub.s32 %s34, %s46
      %s48 = ssub.s32 %s35, %s42
      %s49 = sor.u32 %s47, %s48
      %p50 = scmp.eq.s32.totalorder %s49, 0
      %s52 = sadd.s32 %s51, 1
      %s53 = scalar_select %p50, %s51, %s52
      %p56 = pneg %p50
      %p57 = scmp.eq.s32.totalorder %s27, 3
      %p58 = por %p56, %p57
      %p59 = scmp.ne.s32.totalorder %s51, %s54
      %p60 = scmp.eq.s32.totalorder %s27, 0
      %p61 = por %p59, %p60
      %p62 = scmp.ne.s32.totalorder %s51, %s54
      %p63 = scmp.eq.s32.totalorder %s32, 3
      %p64 = por %p62, %p63
      %p65 = scmp.ne.s32.totalorder %s54, %s55
      %p66 = scmp.eq.s32.totalorder %s32, 0
      %p67 = por %p65, %p66
      %p68 = scmp.ne.s32.totalorder %s54, %s55
      %p69 = scmp.eq.s32.totalorder %s33, 3
      %p70 = por %p68, %p69
      %p72 = scmp.ne.s32.totalorder %s55, %s71
      %p73 = scmp.eq.s32.totalorder %s33, 0
      %p74 = por %p72, %p73
      %s75 = ssub.s32 %s35, 1
      %p76 = scmp.gt.s32.totalorder %s75, 0
      %s77 = scalar_select %p76, %s75, 0
      %s78 = ssub.s32 %s42, 1
      %p79 = scmp.gt.s32.totalorder %s78, 0
      %s80 = scalar_select %p79, %s78, 0
      %s81 = ssub.s32 %s34, %s46
      %s82 = ssub.s32 %s77, %s80
      %s83 = sor.u32 %s81, %s82
      %p84 = scmp.eq.s32.totalorder %s83, 0
      %s86 = sadd.s32 %s85, 1
      %s87 = scalar_select %p84, %s85, %s86
      %p90 = pneg %p84
      %p91 = scmp.eq.s32.totalorder %s27, 3
      %p92 = por %p90, %p91
      %p93 = scmp.ne.s32.totalorder %s85, %s88
      %p94 = scmp.eq.s32.totalorder %s27, 0
      %p95 = por %p93, %p94
      %p96 = scmp.ne.s32.totalorder %s85, %s88
      %p97 = scmp.eq.s32.totalorder %s32, 3
      %p98 = por %p96, %p97
      %p99 = scmp.ne.s32.totalorder %s88, %s89
      %p100 = scmp.eq.s32.totalorder %s32, 0
      %p101 = por %p99, %p100
      %p102 = scmp.ne.s32.totalorder %s88, %s89
      %p103 = scmp.eq.s32.totalorder %s33, 3
      %p104 = por %p102, %p103
      %p106 = scmp.ne.s32.totalorder %s89, %s105
      %p107 = scmp.eq.s32.totalorder %s33, 0
      %p108 = por %p106, %p107
      %s109 = sadd.s32 %s35, 1
      %p110 = scmp.lt.s32.totalorder %s109, 1
      %s111 = scalar_select %p110, %s109, 1
      %s112 = sadd.s32 %s42, 1
      %p113 = scmp.lt.s32.totalorder %s112, 1
      %s114 = scalar_select %p113, %s112, 1
      %s115 = ssub.s32 %s34, %s46
      %s116 = ssub.s32 %s111, %s114
      %s117 = sor.u32 %s115, %s116
      %p118 = scmp.eq.s32.totalorder %s117, 0
      %s120 = sadd.s32 %s119, 1
      %s121 = scalar_select %p118, %s119, %s120
      %p124 = pneg %p118
      %p125 = scmp.eq.s32.totalorder %s27, 3
      %p126 = por %p124, %p125
      %p127 = scmp.ne.s32.totalorder %s119, %s122
      %p128 = scmp.eq.s32.totalorder %s27, 0
      %p129 = por %p127, %p128
      %p130 = scmp.ne.s32.totalorder %s119, %s122
      %p131 = scmp.eq.s32.totalorder %s32, 3
      %p132 = por %p130, %p131
      %p133 = scmp.ne.s32.totalorder %s122, %s123
      %p134 = scmp.eq.s32.totalorder %s32, 0
      %p135 = por %p133, %p134
      %p136 = scmp.ne.s32.totalorder %s122, %s123
      %p137 = scmp.eq.s32.totalorder %s33, 3
      %p138 = por %p136, %p137
      %p140 = scmp.ne.s32.totalorder %s123, %s139
      %p141 = scmp.eq.s32.totalorder %s33, 0
      %p142 = por %p140, %p141
      %s144 = sadd.s32 %s143, 1
      %p147 = scmp.eq.s32.totalorder %s27, 3
      %p148 = scmp.ne.s32.totalorder %s143, %s145
      %p149 = scmp.eq.s32.totalorder %s27, 0
      %p150 = por %p148, %p149
      %p151 = scmp.ne.s32.totalorder %s143, %s145
      %p152 = scmp.eq.s32.totalorder %s32, 3
      %p153 = por %p151, %p152
      %p154 = scmp.ne.s32.totalorder %s145, %s146
      %p155 = scmp.eq.s32.totalorder %s32, 0
      %p156 = por %p154, %p155
      %p157 = scmp.ne.s32.totalorder %s145, %s146
      %p158 = scmp.eq.s32.totalorder %s33, 3
      %p159 = por %p157, %p158
      %p161 = scmp.ne.s32.totalorder %s146, %s160
      %p162 = scmp.eq.s32.totalorder %s33, 0
      %p163 = por %p161, %p162
      %s165 = sadd.s32 %s164, 1
      %p168 = scmp.eq.s32.totalorder %s27, 3
      %p169 = scmp.ne.s32.totalorder %s164, %s166
      %p170 = scmp.eq.s32.totalorder %s27, 0
      %p171 = por %p169, %p170
      %p172 = scmp.ne.s32.totalorder %s164, %s166
      %p173 = scmp.eq.s32.totalorder %s32, 3
      %p174 = por %p172, %p173
      %p175 = scmp.ne.s32.totalorder %s166, %s167
      %p176 = scmp.eq.s32.totalorder %s32, 0
      %p177 = por %p175, %p176
      %p178 = scmp.ne.s32.totalorder %s166, %s167
      %p179 = scmp.eq.s32.totalorder %s33, 3
      %p180 = por %p178, %p179
      %p182 = scmp.ne.s32.totalorder %s167, %s181
      %p183 = scmp.eq.s32.totalorder %s33, 0
      %p184 = por %p182, %p183
      %s186 = sadd.s32 %s185, 1
      %p189 = scmp.eq.s32.totalorder %s27, 3
      %p190 = scmp.ne.s32.totalorder %s185, %s187
      %p191 = scmp.eq.s32.totalorder %s27, 0
      %p192 = por %p190, %p191
      %p193 = scmp.ne.s32.totalorder %s185, %s187
      %p194 = scmp.eq.s32.totalorder %s32, 3
      %p195 = por %p193, %p194
      %p196 = scmp.ne.s32.totalorder %s187, %s188
      %p197 = scmp.eq.s32.totalorder %s32, 0
      %p198 = por %p196, %p197
      %p199 = scmp.ne.s32.totalorder %s187, %s188
      %p200 = scmp.eq.s32.totalorder %s33, 3
      %p201 = por %p199, %p200
      %p203 = scmp.ne.s32.totalorder %s188, %s202
      %p204 = scmp.eq.s32.totalorder %s33, 0
      %p205 = por %p203, %p204
      %s207 = sadd.s32 %s206, 1
      %p210 = scmp.eq.s32.totalorder %s27, 3
      %p211 = scmp.ne.s32.totalorder %s206, %s208
      %p212 = scmp.eq.s32.totalorder %s27, 0
      %p213 = por %p211, %p212
      %p214 = scmp.ne.s32.totalorder %s206, %s208
      %p215 = scmp.eq.s32.totalorder %s32, 3
      %p216 = por %p214, %p215
      %p217 = scmp.ne.s32.totalorder %s208, %s209
      %p218 = scmp.eq.s32.totalorder %s32, 0
      %p219 = por %p217, %p218
      %p220 = scmp.ne.s32.totalorder %s208, %s209
      %p221 = scmp.eq.s32.totalorder %s33, 3
      %p222 = por %p220, %p221
      %p224 = scmp.ne.s32.totalorder %s209, %s223
      %p225 = scmp.eq.s32.totalorder %s33, 0
      %p226 = por %p224, %p225
      %s228 = sadd.s32 %s227, 1
      %p231 = scmp.eq.s32.totalorder %s27, 3
      %p232 = scmp.ne.s32.totalorder %s227, %s229
      %p233 = scmp.eq.s32.totalorder %s27, 0
      %p234 = por %p232, %p233
      %p235 = scmp.ne.s32.totalorder %s227, %s229
      %p236 = scmp.eq.s32.totalorder %s32, 3
      %p237 = por %p235, %p236
      %p238 = scmp.ne.s32.totalorder %s229, %s230
      %p239 = scmp.eq.s32.totalorder %s32, 0
      %p240 = por %p238, %p239
      %p241 = scmp.ne.s32.totalorder %s229, %s230
      %p242 = scmp.eq.s32.totalorder %s33, 3
      %p243 = por %p241, %p242
      %p245 = scmp.ne.s32.totalorder %s230, %s244
      %p246 = scmp.eq.s32.totalorder %s33, 0
      %p247 = por %p245, %p246
      %s249 = sadd.s32 %s248, 1
      %p252 = scmp.eq.s32.totalorder %s27, 3
      %p253 = scmp.ne.s32.totalorder %s248, %s250
      %p254 = scmp.eq.s32.totalorder %s27, 0
      %p255 = por %p253, %p254
      %p256 = scmp.ne.s32.totalorder %s248, %s250
      %p257 = scmp.eq.s32.totalorder %s32, 3
      %p258 = por %p256, %p257
      %p259 = scmp.ne.s32.totalorder %s250, %s251
      %p260 = scmp.eq.s32.totalorder %s32, 0
      %p261 = por %p259, %p260
      %p262 = scmp.ne.s32.totalorder %s250, %s251
      %p263 = scmp.eq.s32.totalorder %s33, 3
      %p264 = por %p262, %p263
      %p266 = scmp.ne.s32.totalorder %s251, %s265
      %p267 = scmp.eq.s32.totalorder %s33, 0
      %p268 = por %p266, %p267
      %s269 = ssub.s32 %s34, %s46
      %s270 = ssub.s32 %s35, %s42
      %s271 = sor.u32 %s269, %s270
      %p272 = scmp.eq.s32.totalorder %s271, 0
      %s274 = sadd.s32 %s273, 1
      %s275 = scalar_select %p272, %s273, %s274
      %p278 = pneg %p272
      %p279 = scmp.eq.s32.totalorder %s27, 3
      %p280 = por %p278, %p279
      %p281 = scmp.ne.s32.totalorder %s273, %s276
      %p282 = scmp.eq.s32.totalorder %s27, 0
      %p283 = por %p281, %p282
      %p284 = scmp.ne.s32.totalorder %s273, %s276
      %p285 = scmp.eq.s32.totalorder %s32, 3
      %p286 = por %p284, %p285
      %p287 = scmp.ne.s32.totalorder %s276, %s277
      %p288 = scmp.eq.s32.totalorder %s32, 0
      %p289 = por %p287, %p288
      %p290 = scmp.ne.s32.totalorder %s276, %s277
      %p291 = scmp.eq.s32.totalorder %s33, 3
      %p292 = por %p290, %p291
      %p294 = scmp.ne.s32.totalorder %s277, %s293
      %p295 = scmp.eq.s32.totalorder %s33, 0
      %p296 = por %p294, %p295
      %p297 = scmp.le.s32.totalorder 1, %s27
      %p298 = scmp.lt.s32.totalorder %s27, 5
      %p299 = pnand %p297, %p298
      %p300 = pneg %p299
      // Predicated region
      $region9: #{tpu_custom_call.1} parent=5 // pred_check
        _
      $region10: #{tpu_custom_call.1} parent=5 // pred_check_branch
        %302 = sbr.rel (%p299) target = $region12
      $region11: #{tpu_custom_call.1} parent=5 // pred_region
        %s303 = ssub.s32 %s27, 1
        // Predicated region
        $region13: #{tpu_custom_call.1} parent=11 // pred_check
          %p304 = pneg %p156
        $region14: #{tpu_custom_call.1} parent=11 // pred_check_branch
          %306 = sbr.rel (%p304) target = $region16
        $region15: #{tpu_custom_call.1} parent=11 // pred_region
          %s308 = ssub.s32 576, 576
          %309 = vsyncadd [#allocation9], %s308
          %s310 = sshll.u32 [#allocation8], 4
          %s311 = int_to_ptr.vmem [resolvable:$true] %s310
          %316 = dma.hbm_to_vmem [thread:$0]  %s3, 576, %s311, [#allocation9], 64, 64, 4
        $region16: #{tpu_custom_call.1} parent=11 // pred_fallthru
          _
        // Predicated region
        $region17: #{tpu_custom_call.1} parent=11 // pred_check
          %p317 = pneg %p177
        $region18: #{tpu_custom_call.1} parent=11 // pred_check_branch
          %319 = sbr.rel (%p317) target = $region20
        $region19: #{tpu_custom_call.1} parent=11 // pred_region
          %s321 = ssub.s32 128, 128
          %322 = vsyncadd [#allocation9], %s321
          %s324 = sshll.u32 [#allocation10], 4
          %s325 = int_to_ptr.vmem [resolvable:$true] %s324
          %327 = dma.hbm_to_vmem [thread:$0]  %s4, 128, %s325, [#allocation9]
        $region20: #{tpu_custom_call.1} parent=11 // pred_fallthru
          _
        // Predicated region
        $region21: #{tpu_custom_call.1} parent=11 // pred_check
          %p328 = pneg %p198
        $region22: #{tpu_custom_call.1} parent=11 // pred_check_branch
          %330 = sbr.rel (%p328) target = $region24
        $region23: #{tpu_custom_call.1} parent=11 // pred_region
          %s332 = ssub.s32 128, 128
          %333 = vsyncadd [#allocation12], %s332
          %s335 = sshll.u32 [#allocation11], 4
          %s336 = int_to_ptr.vmem [resolvable:$true] %s335
          %338 = dma.hbm_to_vmem [thread:$0]  %s5, 128, %s336, [#allocation12]
        $region24: #{tpu_custom_call.1} parent=11 // pred_fallthru
          _
        // Predicated region
        $region25: #{tpu_custom_call.1} parent=11 // pred_check
          %p339 = pneg %p219
        $region26: #{tpu_custom_call.1} parent=11 // pred_check_branch
          %341 = sbr.rel (%p339) target = $region28
        $region27: #{tpu_custom_call.1} parent=11 // pred_region
          %s343 = ssub.s32 64, 64
          %344 = vsyncadd [#allocation12], %s343
          %s346 = sshll.u32 [#allocation13], 4
          %s347 = int_to_ptr.vmem [resolvable:$true] %s346
          %349 = dma.hbm_to_vmem [thread:$0]  %s6, 64, %s347, [#allocation12]
        $region28: #{tpu_custom_call.1} parent=11 // pred_fallthru
          _
        // Predicated region
        $region29: #{tpu_custom_call.1} parent=11 // pred_check
          %p350 = pneg %p240
        $region30: #{tpu_custom_call.1} parent=11 // pred_check_branch
          %352 = sbr.rel (%p350) target = $region32
        $region31: #{tpu_custom_call.1} parent=11 // pred_region
          %s354 = ssub.s32 64, 64
          %355 = vsyncadd [#allocation15], %s354
          %s357 = sshll.u32 [#allocation14], 4
          %s358 = int_to_ptr.vmem [resolvable:$true] %s357
          %360 = dma.hbm_to_vmem [thread:$0]  %s7, 64, %s358, [#allocation15]
        $region32: #{tpu_custom_call.1} parent=11 // pred_fallthru
          _
        // Predicated region
        $region33: #{tpu_custom_call.1} parent=11 // pred_check
          %p361 = pneg %p261
        $region34: #{tpu_custom_call.1} parent=11 // pred_check_branch
          %363 = sbr.rel (%p361) target = $region36
        $region35: #{tpu_custom_call.1} parent=11 // pred_region
          %s365 = ssub.s32 32, 32
          %366 = vsyncadd [#allocation15], %s365
          %s368 = sshll.u32 [#allocation16], 4
          %s369 = int_to_ptr.vmem [resolvable:$true] %s368
          %371 = dma.hbm_to_vmem [thread:$0]  %s8, 32, %s369, [#allocation15]
        $region36: #{tpu_custom_call.1} parent=11 // pred_fallthru
          _
      $region12: #{tpu_custom_call.1} parent=5 // pred_fallthru
        _
      %p372 = scmp.lt.s32.totalorder %s27, 4
      // Predicated region
      $region37: #{tpu_custom_call.1} parent=5 // pred_check
        %p373 = pneg %p372
      $region38: #{tpu_custom_call.1} parent=5 // pred_check_branch
        %375 = sbr.rel (%p373) target = $region40
      $region39: #{tpu_custom_call.1} parent=5 // pred_region
        // Predicated region
        $region41: #{tpu_custom_call.1} parent=39 // pred_check
          %p376 = pneg %p61
        $region42: #{tpu_custom_call.1} parent=39 // pred_check_branch
          %378 = sbr.rel (%p376) target = $region44
        $region43: #{tpu_custom_call.1} parent=39 // pred_region
          %s379 = sand.u32 %s51, 1
          %s380 = scalar_lea.sflag [#allocation3], %s379
          %s381 = sand.u32 %s51, 1
          %s382 = smul.addr %s381, 4
          %s383 = scalar_lea.vmem [#allocation2], %s382
          %s385 = ssub.s32 64, 64
          %386 = vsyncadd %s380, %s385
          %s387 = smul.addr %s34, 2
          %s388 = sadd.s32 %s35, %s387
          %s389 = smul.addr %s388, 64
          %s390 = scalar_lea.hbm %s0, %s389
          %s392 = sshll.u32 %s383, 4
          %s393 = int_to_ptr.vmem [resolvable:$true] %s392
          %395 = dma.hbm_to_vmem [thread:$0]  %s390, 64, %s393, %s380
        $region44: #{tpu_custom_call.1} parent=39 // pred_fallthru
          _
        // Predicated region
        $region45: #{tpu_custom_call.1} parent=39 // pred_check
          %p396 = pneg %p95
        $region46: #{tpu_custom_call.1} parent=39 // pred_check_branch
          %398 = sbr.rel (%p396) target = $region48
        $region47: #{tpu_custom_call.1} parent=39 // pred_region
          %s399 = sand.u32 %s27, 1
          %s400 = scalar_lea.sflag [#allocation6], %s399
          %s401 = sand.u32 %s85, 1
          %s402 = smul.addr %s401, 4
          %s403 = scalar_lea.vmem [#allocation5], %s402
          %s404 = ssub.s32 %s35, 1
          %p405 = scmp.gt.s32.totalorder %s404, 0
          %s406 = scalar_select %p405, %s404, 0
          %s408 = ssub.s32 64, 64
          %409 = vsyncadd %s400, %s408
          %s410 = smul.addr %s34, 2
          %s411 = sadd.s32 %s406, %s410
          %s412 = smul.addr %s411, 64
          %s413 = scalar_lea.hbm %s1, %s412
          %s415 = sshll.u32 %s403, 4
          %s416 = int_to_ptr.vmem [resolvable:$true] %s415
          %418 = dma.hbm_to_vmem [thread:$0]  %s413, 64, %s416, %s400
        $region48: #{tpu_custom_call.1} parent=39 // pred_fallthru
          _
        // Predicated region
        $region49: #{tpu_custom_call.1} parent=39 // pred_check
          %p419 = pneg %p129
        $region50: #{tpu_custom_call.1} parent=39 // pred_check_branch
          %421 = sbr.rel (%p419) target = $region52
        $region51: #{tpu_custom_call.1} parent=39 // pred_region
          %s422 = sand.u32 %s27, 1
          %s423 = scalar_lea.sflag [#allocation6], %s422
          %s424 = sand.u32 %s119, 1
          %s425 = smul.addr %s424, 4
          %s426 = scalar_lea.vmem [#allocation7], %s425
          %s427 = sadd.s32 %s35, 1
          %p428 = scmp.lt.s32.totalorder %s427, 1
          %s429 = scalar_select %p428, %s427, 1
          %s431 = ssub.s32 64, 64
          %432 = vsyncadd %s423, %s431
          %s433 = smul.addr %s34, 2
          %s434 = sadd.s32 %s429, %s433
          %s435 = smul.addr %s434, 64
          %s436 = scalar_lea.hbm %s2, %s435
          %s438 = sshll.u32 %s426, 4
          %s439 = int_to_ptr.vmem [resolvable:$true] %s438
          %441 = dma.hbm_to_vmem [thread:$0]  %s436, 64, %s439, %s423
        $region52: #{tpu_custom_call.1} parent=39 // pred_fallthru
          _
      $region40: #{tpu_custom_call.1} parent=5 // pred_fallthru
        _
      %p442 = scmp.le.s32.totalorder 1, %s27
      %p443 = scmp.lt.s32.totalorder %s27, 5
      %p444 = pnand %p442, %p443
      %p445 = pneg %p444
      // Predicated region
      $region53: #{tpu_custom_call.1} parent=5 // pred_check
        _
      $region54: #{tpu_custom_call.1} parent=5 // pred_check_branch
        %447 = sbr.rel (%p444) target = $region56
      $region55: #{tpu_custom_call.1} parent=5 // pred_region
        %s448 = ssub.s32 %s27, 1
        %s449 = sand.u32 %s54, 1
        %s450 = scalar_lea.sflag [#allocation3], %s449
        %s451 = sand.u32 %s54, 1
        %s452 = smul.addr %s451, 4
        %s453 = scalar_lea.vmem [#allocation2], %s452
        // Predicated region
        $region57: #{tpu_custom_call.1} parent=55 // pred_check
          %p454 = pneg %p67
        $region58: #{tpu_custom_call.1} parent=55 // pred_check_branch
          %456 = sbr.rel (%p454) target = $region60
        $region59: #{tpu_custom_call.1} parent=55 // pred_region
          %457 = dma.done %s450, 64
        $region60: #{tpu_custom_call.1} parent=55 // pred_fallthru
          _
        %s458 = sand.u32 %s32, 1
        %s459 = scalar_lea.sflag [#allocation6], %s458
        %s460 = sand.u32 %s88, 1
        %s461 = smul.addr %s460, 4
        %s462 = scalar_lea.vmem [#allocation5], %s461
        // Predicated region
        $region61: #{tpu_custom_call.1} parent=55 // pred_check
          %p463 = pneg %p101
        $region62: #{tpu_custom_call.1} parent=55 // pred_check_branch
          %465 = sbr.rel (%p463) target = $region64
        $region63: #{tpu_custom_call.1} parent=55 // pred_region
          %466 = dma.done %s459, 64
        $region64: #{tpu_custom_call.1} parent=55 // pred_fallthru
          _
        %s467 = sand.u32 %s32, 1
        %s468 = scalar_lea.sflag [#allocation6], %s467
        %s469 = sand.u32 %s122, 1
        %s470 = smul.addr %s469, 4
        %s471 = scalar_lea.vmem [#allocation7], %s470
        // Predicated region
        $region65: #{tpu_custom_call.1} parent=55 // pred_check
          %p472 = pneg %p135
        $region66: #{tpu_custom_call.1} parent=55 // pred_check_branch
          %474 = sbr.rel (%p472) target = $region68
        $region67: #{tpu_custom_call.1} parent=55 // pred_region
          %475 = dma.done %s468, 64
        $region68: #{tpu_custom_call.1} parent=55 // pred_fallthru
          _
        // Predicated region
        $region69: #{tpu_custom_call.1} parent=55 // pred_check
          %p476 = pneg %p156
        $region70: #{tpu_custom_call.1} parent=55 // pred_check_branch
          %478 = sbr.rel (%p476) target = $region72
        $region71: #{tpu_custom_call.1} parent=55 // pred_region
          %479 = dma.done [#allocation9], 576
        $region72: #{tpu_custom_call.1} parent=55 // pred_fallthru
          _
        // Predicated region
        $region73: #{tpu_custom_call.1} parent=55 // pred_check
          %p480 = pneg %p177
        $region74: #{tpu_custom_call.1} parent=55 // pred_check_branch
          %482 = sbr.rel (%p480) target = $region76
        $region75: #{tpu_custom_call.1} parent=55 // pred_region
          %483 = dma.done [#allocation9], 128
        $region76: #{tpu_custom_call.1} parent=55 // pred_fallthru
          _
        // Predicated region
        $region77: #{tpu_custom_call.1} parent=55 // pred_check
          %p484 = pneg %p198
        $region78: #{tpu_custom_call.1} parent=55 // pred_check_branch
          %486 = sbr.rel (%p484) target = $region80
        $region79: #{tpu_custom_call.1} parent=55 // pred_region
          %487 = dma.done [#allocation12], 128
        $region80: #{tpu_custom_call.1} parent=55 // pred_fallthru
          _
        // Predicated region
        $region81: #{tpu_custom_call.1} parent=55 // pred_check
          %p488 = pneg %p219
        $region82: #{tpu_custom_call.1} parent=55 // pred_check_branch
          %490 = sbr.rel (%p488) target = $region84
        $region83: #{tpu_custom_call.1} parent=55 // pred_region
          %491 = dma.done [#allocation12], 64
        $region84: #{tpu_custom_call.1} parent=55 // pred_fallthru
          _
        // Predicated region
        $region85: #{tpu_custom_call.1} parent=55 // pred_check
          %p492 = pneg %p240
        $region86: #{tpu_custom_call.1} parent=55 // pred_check_branch
          %494 = sbr.rel (%p492) target = $region88
        $region87: #{tpu_custom_call.1} parent=55 // pred_region
          %495 = dma.done [#allocation15], 64
        $region88: #{tpu_custom_call.1} parent=55 // pred_fallthru
          _
        // Predicated region
        $region89: #{tpu_custom_call.1} parent=55 // pred_check
          %p496 = pneg %p261
        $region90: #{tpu_custom_call.1} parent=55 // pred_check_branch
          %498 = sbr.rel (%p496) target = $region92
        $region91: #{tpu_custom_call.1} parent=55 // pred_region
          %499 = dma.done [#allocation15], 32
        $region92: #{tpu_custom_call.1} parent=55 // pred_fallthru
          _
        %s500 = sand.u32 %s54, 1
        %s501 = scalar_lea.sflag [#allocation3], %s500
        %s502 = sand.u32 %s54, 1
        %s503 = smul.addr %s502, 4
        %s504 = scalar_lea.vmem [#allocation2], %s503
        %p505 = pneg %p67
        %p506 = pneg %p64
        %s507 = sand.u32 %s32, 1
        %s508 = scalar_lea.sflag [#allocation6], %s507
        %s509 = sand.u32 %s88, 1
        %s510 = smul.addr %s509, 4
        %s511 = scalar_lea.vmem [#allocation5], %s510
        %p512 = pneg %p101
        %p513 = pneg %p98
        %s514 = sand.u32 %s32, 1
        %s515 = scalar_lea.sflag [#allocation6], %s514
        %s516 = sand.u32 %s122, 1
        %s517 = smul.addr %s516, 4
        %s518 = scalar_lea.vmem [#allocation7], %s517
        %p519 = pneg %p135
        %p520 = pneg %p132
        %p521 = pneg %p156
        %p522 = pneg %p153
        %p523 = pneg %p177
        %p524 = pneg %p174
        %p525 = pneg %p198
        %p526 = pneg %p195
        %p527 = pneg %p219
        %p528 = pneg %p216
        %p529 = pneg %p240
        %p530 = pneg %p237
        %p531 = pneg %p261
        %p532 = pneg %p258
        %p533 = pneg %p289
        %p534 = pneg %p286
        %s535 = sand.u32 %s276, 1
        %s536 = scalar_lea.sflag [#allocation4], %s535
        %s537 = sand.u32 %s276, 1
        %s538 = smul.addr %s537, 4
        %s539 = scalar_lea.vmem [#allocation17], %s538
        %s540 = ssub.s32 %s37, 1
        %p541 = scmp.gt.s32.totalorder %s540, 0
        %s542 = scalar_select %p541, %s540, 0
        %s543 = sadd.s32 %s37, 1
        %p544 = scmp.lt.s32.totalorder %s543, 1
        %s545 = scalar_select %p544, %s543, 1
        %v546 = vld [vmem:[%s453] sm:$0xf]
        %v547 = vld [vmem:[#allocation8] sm:$0xf]
        %v548 = vld [vmem:[#allocation8 + $0x4] sm:$0xf]
        %v549 = vld [vmem:[#allocation8 + $0x8] sm:$0xf]
        %v550 = vld [vmem:[#allocation8 + $0xc] sm:$0xf]
        %v551 = vld [vmem:[#allocation8 + $0x10] sm:$0xf]
        %v552 = vld [vmem:[#allocation8 + $0x14] sm:$0xf]
        %v553 = vld [vmem:[#allocation8 + $0x18] sm:$0xf]
        %v554 = vld [vmem:[#allocation8 + $0x1c] sm:$0xf]
        %v555 = vld [vmem:[#allocation8 + $0x20] sm:$0xf]
        %v556 = vld [vmem:[#allocation16] sm:$0x1]
        %v557 = vld [vmem:[#allocation16 + $0x1] sm:$0x1]
        %p558 = scmp.gt.s32.totalorder %s37, 0
        %s559 = scalar_select %p558, 1, 0
        %s560 = scvt.s32.f32 %s559
        %p561 = scmp.lt.s32.totalorder %s37, 1
        %s562 = scalar_select %p561, 1, 0
        %s563 = scvt.s32.f32 %s562
        %v564 = vld [vmem:[%s462] sm:$0xf]
        %v565 = vstv %s560
        %v566 = vmul.f32 %v564, %v565
        %v567 = vld [vmem:[%s471] sm:$0xf]
        %v568 = vstv %s563
        %v569 = vmul.f32 %v567, %v568
        %571 = vrot.lane.b32.xlu0 %v566, 16
        %v572 = vpop.permute.xlu0 %571
        %575 = vrot.lane.b32.xlu0 %v546, 16
        %v576 = vpop.permute.xlu0 %575
        %vm578 = vcmask 130048
        %v579 = vsel %vm578, %v572, %v576
        %580 = vrot.lane.b32.xlu0 %v546, 112
        %v581 = vpop.permute.xlu0 %580
        %584 = vrot.lane.b32.xlu0 %v569, 112
        %v585 = vpop.permute.xlu0 %584
        %vm587 = vcmask 916480
        %v588 = vsel %vm587, %v581, %v585
        %590 = vset.pattern.permute.xlu0 0
        %591 = vperm.xlu0 %590, %v551
        %v592 = vpop.permute.xlu0 %591
        %v594 = vmul.f32 %v592, %v546
        %596 = vset.pattern.permute.xlu0 0
        %597 = vperm.xlu0 %596, %v548
        %v598 = vpop.permute.xlu0 %597
        %v600 = vmul.f32 %v598, %v579
        %v601 = vadd.f32 %v594, %v600
        %603 = vrot.lane.b32.xlu0 %v579, 1
        %v604 = vpop.permute.xlu0 %603
        %vm606 = vcmask 7168
        %v607 = vsel %vm606, 0.0, %v604
        %v608 = vlaneseq
        %v609 = vshrl.u32 %v608, 7
        %v610 = vsub.s32 0, %v609
        %v611 = vrot.slane %v556, %v610
        %v612 = vmul.f32 %v607, %v611
        %614 = vset.pattern.permute.xlu0 0
        %615 = vperm.xlu0 %614, %v547
        %v616 = vpop.permute.xlu0 %615
        %v618 = vmul.f32 %v616, %v612
        %v619 = vadd.f32 %v601, %v618
        %620 = vrot.lane.b32.xlu0 %v579, 127
        %v621 = vpop.permute.xlu0 %620
        %vm623 = vcmask 1039360
        %v624 = vsel %vm623, %v621, 0.0
        %v625 = vlaneseq
        %v626 = vshrl.u32 %v625, 7
        %v627 = vsub.s32 0, %v626
        %v628 = vrot.slane %v557, %v627
        %v629 = vmul.f32 %v624, %v628
        %631 = vset.pattern.permute.xlu0 0
        %632 = vperm.xlu0 %631, %v549
        %v633 = vpop.permute.xlu0 %632
        %v635 = vmul.f32 %v633, %v629
        %v636 = vadd.f32 %v619, %v635
        %637 = vrot.lane.b32.xlu0 %v546, 1
        %v638 = vpop.permute.xlu0 %637
        %v640 = vsel %vm606, 0.0, %v638
        %v641 = vmul.f32 %v640, %v611
        %643 = vset.pattern.permute.xlu0 0
        %644 = vperm.xlu0 %643, %v550
        %v645 = vpop.permute.xlu0 %644
        %v647 = vmul.f32 %v645, %v641
        %v648 = vadd.f32 %v636, %v647
        %649 = vrot.lane.b32.xlu0 %v546, 127
        %v650 = vpop.permute.xlu0 %649
        %v652 = vsel %vm623, %v650, 0.0
        %v653 = vmul.f32 %v652, %v628
        %655 = vset.pattern.permute.xlu0 0
        %656 = vperm.xlu0 %655, %v552
        %v657 = vpop.permute.xlu0 %656
        %v659 = vmul.f32 %v657, %v653
        %v660 = vadd.f32 %v648, %v659
        %662 = vset.pattern.permute.xlu0 0
        %663 = vperm.xlu0 %662, %v554
        %v664 = vpop.permute.xlu0 %663
        %v666 = vmul.f32 %v664, %v588
        %v667 = vadd.f32 %v660, %v666
        %669 = vrot.lane.b32.xlu0 %v588, 1
        %v670 = vpop.permute.xlu0 %669
        %v672 = vsel %vm606, 0.0, %v670
        %v673 = vmul.f32 %v672, %v611
        %675 = vset.pattern.permute.xlu0 0
        %676 = vperm.xlu0 %675, %v553
        %v677 = vpop.permute.xlu0 %676
        %v679 = vmul.f32 %v677, %v673
        %v680 = vadd.f32 %v667, %v679
        %681 = vrot.lane.b32.xlu0 %v588, 127
        %v682 = vpop.permute.xlu0 %681
        %v684 = vsel %vm623, %v682, 0.0
        %v685 = vmul.f32 %v684, %v628
        %687 = vset.pattern.permute.xlu0 0
        %688 = vperm.xlu0 %687, %v555
        %v689 = vpop.permute.xlu0 %688
        %v691 = vmul.f32 %v689, %v685
        %v692 = vadd.f32 %v680, %v691
        %v693 = vld [vmem:[#allocation10] sm:$0xff]
        %v694 = vld [vmem:[#allocation11] sm:$0xff]
        %696 = vset.pattern.permute.xlu0 0
        %697 = vperm.xlu0 %696, %v694
        %v698 = vpop.permute.xlu0 %697
        %vm700 = vcmask 31744
        %v702 = vsel %vm700, %v693, 0
        %vm704 = vcmask 1043456
        %v706 = vsel %vm704, %v692, 0
        %708 = vmatprep.subr.mxu0 0.0
        %709 = vmatpush1.msra.mxu0 %v706
        %710 = vmatprep.subr.mxu0 0.0
        %711 = vmatpush1.msra.mxu0 0.0
        %712 = vmatprep.subr.mxu0 0.0
        %713 = vmatpush1.msra.mxu0 0.0
        %714 = vmatprep.subr.mxu0 0.0
        %715 = vmatpush1.msra.mxu0 0.0
        %716 = vmatprep.subr.mxu0 0.0
        %717 = vmatpush1.msra.mxu0 0.0
        %718 = vmatprep.subr.mxu0 0.0
        %719 = vmatpush1.msra.mxu0 0.0
        %720 = vmatprep.subr.mxu0 0.0
        %721 = vmatpush1.msra.mxu0 0.0
        %722 = vmatprep.subr.mxu0 0.0
        %723 = vmatpush1.msra.mxu0 0.0
        %724 = vmatprep.subr.mxu0 0.0
        %725 = vmatpush1.msra.mxu0 0.0
        %726 = vmatprep.subr.mxu0 0.0
        %727 = vmatpush1.msra.mxu0 0.0
        %728 = vmatprep.subr.mxu0 0.0
        %729 = vmatpush1.msra.mxu0 0.0
        %730 = vmatprep.subr.mxu0 0.0
        %731 = vmatpush1.msra.mxu0 0.0
        %732 = vmatprep.subr.mxu0 0.0
        %733 = vmatpush1.msra.mxu0 0.0
        %734 = vmatprep.subr.mxu0 0.0
        %735 = vmatpush1.msra.mxu0 0.0
        %736 = vmatprep.subr.mxu0 0.0
        %737 = vmatpush1.msra.mxu0 0.0
        %738 = vmatprep.subr.mxu0 0.0
        %739 = vmatpush1.msra.mxu0 0.0
        %740 = vmatprep.subr.mxu0 0.0
        %741 = vmatpush1.msra.mxu0 0.0
        %742 = vmatprep.subr.mxu0 0.0
        %743 = vmatpush1.msra.mxu0 0.0
        %744 = vmatprep.subr.mxu0 0.0
        %745 = vmatpush1.msra.mxu0 0.0
        %746 = vmatprep.subr.mxu0 0.0
        %747 = vmatpush1.msra.mxu0 0.0
        %748 = vmatprep.subr.mxu0 0.0
        %749 = vmatpush1.msra.mxu0 0.0
        %750 = vmatprep.subr.mxu0 0.0
        %751 = vmatpush1.msra.mxu0 0.0
        %752 = vmatprep.subr.mxu0 0.0
        %753 = vmatpush1.msra.mxu0 0.0
        %754 = vmatprep.subr.mxu0 0.0
        %755 = vmatpush1.msra.mxu0 0.0
        %756 = vmatprep.subr.mxu0 0.0
        %757 = vmatpush1.msra.mxu0 0.0
        %758 = vmatprep.subr.mxu0 0.0
        %759 = vmatpush1.msra.mxu0 0.0
        %760 = vmatprep.subr.mxu0 0.0
        %761 = vmatpush1.msra.mxu0 0.0
        %762 = vmatprep.subr.mxu0 0.0
        %763 = vmatpush1.msra.mxu0 0.0
        %764 = vmatprep.subr.mxu0 0.0
        %765 = vmatpush1.msra.mxu0 0.0
        %766 = vmatprep.subr.mxu0 0.0
        %767 = vmatpush1.msra.mxu0 0.0
        %768 = vmatprep.subr.mxu0 0.0
        %769 = vmatpush1.msra.mxu0 0.0
        %770 = vmatprep.subr.mxu0 0.0
        %771 = vmatpush1.msra.mxu0 0.0
        %772 = vmatprep.mubr.f32.mxu0 0.0
        %773 = vmatmul.mubr.f32.gmra.mrb[0].mxu0 %v702
        %v774 = vpop.f32.mrb[0].mxu0
        %v775 = vadd.f32 %v698, %v774
        %v776 = vpop.f32.mrb[0].mxu0
        %777 = vdwg.mxu0
        %v778 = vmax.f32 %v775, 0.0
        %v779 = vld [vmem:[#allocation13] sm:$0x7]
        %v780 = vld [vmem:[#allocation14] sm:$0x7]
        %782 = vset.pattern.permute.xlu0 0
        %783 = vperm.xlu0 %782, %v780
        %v784 = vpop.permute.xlu0 %783
        %vm786 = vcmask 64512
        %v788 = vsel %vm786, %v779, 0
        %790 = vmatprep.subr.mxu0 0.0
        %791 = vmatpush1.msra.mxu0 %v778
        %792 = vmatprep.subr.mxu0 0.0
        %793 = vmatpush1.msra.mxu0 0.0
        %794 = vmatprep.subr.mxu0 0.0
        %795 = vmatpush1.msra.mxu0 0.0
        %796 = vmatprep.subr.mxu0 0.0
        %797 = vmatpush1.msra.mxu0 0.0
        %798 = vmatprep.subr.mxu0 0.0
        %799 = vmatpush1.msra.mxu0 0.0
        %800 = vmatprep.subr.mxu0 0.0
        %801 = vmatpush1.msra.mxu0 0.0
        %802 = vmatprep.subr.mxu0 0.0
        %803 = vmatpush1.msra.mxu0 0.0
        %804 = vmatprep.subr.mxu0 0.0
        %805 = vmatpush1.msra.mxu0 0.0
        %806 = vmatprep.subr.mxu0 0.0
        %807 = vmatpush1.msra.mxu0 0.0
        %808 = vmatprep.subr.mxu0 0.0
        %809 = vmatpush1.msra.mxu0 0.0
        %810 = vmatprep.subr.mxu0 0.0
        %811 = vmatpush1.msra.mxu0 0.0
        %812 = vmatprep.subr.mxu0 0.0
        %813 = vmatpush1.msra.mxu0 0.0
        %814 = vmatprep.subr.mxu0 0.0
        %815 = vmatpush1.msra.mxu0 0.0
        %816 = vmatprep.subr.mxu0 0.0
        %817 = vmatpush1.msra.mxu0 0.0
        %818 = vmatprep.subr.mxu0 0.0
        %819 = vmatpush1.msra.mxu0 0.0
        %820 = vmatprep.subr.mxu0 0.0
        %821 = vmatpush1.msra.mxu0 0.0
        %822 = vmatprep.subr.mxu0 0.0
        %823 = vmatpush1.msra.mxu0 0.0
        %824 = vmatprep.subr.mxu0 0.0
        %825 = vmatpush1.msra.mxu0 0.0
        %826 = vmatprep.subr.mxu0 0.0
        %827 = vmatpush1.msra.mxu0 0.0
        %828 = vmatprep.subr.mxu0 0.0
        %829 = vmatpush1.msra.mxu0 0.0
        %830 = vmatprep.subr.mxu0 0.0
        %831 = vmatpush1.msra.mxu0 0.0
        %832 = vmatprep.subr.mxu0 0.0
        %833 = vmatpush1.msra.mxu0 0.0
        %834 = vmatprep.subr.mxu0 0.0
        %835 = vmatpush1.msra.mxu0 0.0
        %836 = vmatprep.subr.mxu0 0.0
        %837 = vmatpush1.msra.mxu0 0.0
        %838 = vmatprep.subr.mxu0 0.0
        %839 = vmatpush1.msra.mxu0 0.0
        %840 = vmatprep.subr.mxu0 0.0
        %841 = vmatpush1.msra.mxu0 0.0
        %842 = vmatprep.subr.mxu0 0.0
        %843 = vmatpush1.msra.mxu0 0.0
        %844 = vmatprep.subr.mxu0 0.0
        %845 = vmatpush1.msra.mxu0 0.0
        %846 = vmatprep.subr.mxu0 0.0
        %847 = vmatpush1.msra.mxu0 0.0
        %848 = vmatprep.subr.mxu0 0.0
        %849 = vmatpush1.msra.mxu0 0.0
        %850 = vmatprep.subr.mxu0 0.0
        %851 = vmatpush1.msra.mxu0 0.0
        %852 = vmatprep.subr.mxu0 0.0
        %853 = vmatpush1.msra.mxu0 0.0
        %854 = vmatprep.mubr.f32.mxu0 0.0
        %855 = vmatmul.mubr.f32.gmra.mrb[0].mxu0 %v788
        %v856 = vpop.f32.mrb[0].mxu0
        %v857 = vadd.f32 %v784, %v856
        %v858 = vpop.f32.mrb[0].mxu0
        %859 = vdwg.mxu0
        %860 = vst [vmem:[%s539] sm:$0x7] %v857
        %s861 = sand.u32 %s276, 1
        %s862 = scalar_lea.sflag [#allocation4], %s861
        %s863 = sand.u32 %s276, 1
        %s864 = smul.addr %s863, 4
        %s865 = scalar_lea.vmem [#allocation17], %s864
        // Predicated region
        $region93: #{tpu_custom_call.1} parent=55 // pred_check
          %p866 = pneg %p286
        $region94: #{tpu_custom_call.1} parent=55 // pred_check_branch
          %868 = sbr.rel (%p866) target = $region96
        $region95: #{tpu_custom_call.1} parent=55 // pred_region
          %s870 = ssub.s32 64, 64
          %871 = vsyncadd %s862, %s870
          %s872 = smul.addr %s36, 2
          %s873 = sadd.s32 %s37, %s872
          %s874 = smul.addr %s873, 64
          %s875 = scalar_lea.hbm %s9, %s874
          %s877 = sshll.u32 %s865, 4
          %s878 = int_to_ptr.vmem [resolvable:$true] %s877
          %880 = dma.vmem_to_hbm [thread:$0]  %s878, 64, %s875, %s862
        $region96: #{tpu_custom_call.1} parent=55 // pred_fallthru
          _
      $region56: #{tpu_custom_call.1} parent=5 // pred_fallthru
        _
      %p881 = scmp.le.s32.totalorder 2, %s27
      // Predicated region
      $region97: #{tpu_custom_call.1} parent=5 // pred_check
        %p882 = pneg %p881
      $region98: #{tpu_custom_call.1} parent=5 // pred_check_branch
        %884 = sbr.rel (%p882) target = $region100
      $region99: #{tpu_custom_call.1} parent=5 // pred_region
        %s885 = ssub.s32 %s27, 2
        // Predicated region
        $region101: #{tpu_custom_call.1} parent=99 // pred_check
          %p886 = pneg %p292
        $region102: #{tpu_custom_call.1} parent=99 // pred_check_branch
          %888 = sbr.rel (%p886) target = $region104
        $region103: #{tpu_custom_call.1} parent=99 // pred_region
          %s889 = sand.u32 %s277, 1
          %s890 = scalar_lea.sflag [#allocation4], %s889
          %s891 = sand.u32 %s277, 1
          %s892 = smul.addr %s891, 4
          %s893 = scalar_lea.vmem [#allocation17], %s892
          %894 = dma.done %s890, 64
        $region104: #{tpu_custom_call.1} parent=99 // pred_fallthru
          _
      $region100: #{tpu_custom_call.1} parent=5 // pred_fallthru
        _
    $region6: #{tpu_custom_call.1} parent=1 // loop_footer
      %s31 = sadd.s32 1, %s27
    $region7: #{tpu_custom_call.1} parent=1 // loop_footer_branch
      %26 = sbr.rel target = $region3
    $region8: #{tpu_custom_call.1} parent=1 // loop_exit
      _
    %895 = vsyncpa [#allocation3], 1
    %s896 = scalar_lea.sflag [#allocation3], 1
    %897 = vsyncpa %s896, 1
    %898 = vsyncpa [#allocation6], 1
    %s899 = scalar_lea.sflag [#allocation6], 1
    %900 = vsyncpa %s899, 1
    %901 = vsyncpa [#allocation9], 1
    %902 = vsyncpa [#allocation12], 1
    %903 = vsyncpa [#allocation15], 1
    %904 = vsyncpa [#allocation4], 1
    %s905 = scalar_lea.sflag [#allocation4], 1
    %906 = vsyncpa %s905, 1

</llo_original>
